<compile_context>
chip_gen: v5e
topology: v5e:2x2
jax: 0.10.0
libtpu: 0.0.40
codegen_flags: <defaults>
</compile_context>

<pallas_src>
import functools

import numpy as np
import jax
import jax.numpy as jnp
from jax.experimental import pallas as pl
from jax.experimental.pallas import tpu as pltpu


def _build_filters(neighbours=np.array([[1, 1, 1], [1, 0, 1], [1, 1, 1]])):
    """Deterministic re-implementation of Loss_flow.__init__ (used for the reference check)."""
    filters = []
    kh, kw = neighbours.shape
    for i in range(kh):
        for j in range(kw):
            if neighbours[i][j] == 1:
                filt = np.zeros((1, kh, kw))
                filt[0][i][j] = -1
                filt[0][kh // 2][kw // 2] = 1
                filters.append(filt)
    return np.array(filters, dtype=np.float32)  # (8, 1, 3, 3)


def _loss_flow_kernel(x_ref, out_ref, colsum_ref, carry_ref, *, H, W, TH):
    # x_ref      : VMEM (TH, 2W) row-tile of the interleaved flow f2[y, 2x+ch]
    # out_ref    : SMEM (1, 1)   scalar loss (written on the last grid step)
    # colsum_ref : VMEM (1, 2W-2) per-lane sum_y D[y,c]^2 accumulator
    # carry_ref  : VMEM (1, 2W)   previous tile's last row (cross-tile boundary)
    W2 = 2 * W
    i = pl.program_id(0)

    @pl.when(i == 0)
    def _init():
        colsum_ref[...] = jnp.zeros_like(colsum_ref)

    cur = x_ref[...].astype(jnp.float32)                  # (TH, W2)

    # Interleaved neighbour difference for conv filter 0 (taps -1@(0,0), +1@(1,1)):
    #   D[y, c] = f2[y+1, c+2] - f2[y, c];  even c -> diff_u, odd c -> diff_v.
    # Differences whose rows y, y+1 are both inside this tile:
    d_in = cur[1:, 2:] - cur[:-1, : W2 - 2]               # (TH-1, W2-2)
    gy = i * TH + jax.lax.broadcasted_iota(jnp.int32, (TH - 1, W2 - 2), 0)
    d_in = jnp.where(gy <= H - 3, d_in, 0.0)              # mask invalid / padded rows
    colsum_ref[...] += jnp.sum(d_in * d_in, axis=0, keepdims=True)

    # Cross-tile difference for y = i*TH - 1 (lower row carried from previous tile).
    @pl.when(jnp.logical_and(i > 0, i * TH <= H - 2))
    def _boundary():
        prev_last = carry_ref[...]                        # (1, W2)
        d_b = cur[0:1, 2:] - prev_last[:, : W2 - 2]       # (1, W2-2)
        colsum_ref[...] += d_b * d_b

    # Carry this tile's last row for the next grid step (written after it was read).
    carry_ref[...] = cur[TH - 1 : TH, :]

    @pl.when(i == pl.num_programs(0) - 1)
    def _finalize():
        cs = colsum_ref[...]                              # (1, W2-2)
        # Even lane 2x: sum_y diff_u^2 ; odd lane 2x+1: sum_y diff_v^2.  Pair them:
        pair = cs[:, : W2 - 3] + cs[:, 1:]                # (1, W2-3); even lanes hold u+v sums
        lane = jax.lax.broadcasted_iota(jnp.int32, pair.shape, 1)
        valid = jnp.logical_and((lane & 1) == 0, lane <= W2 - 6)
        dist = jnp.where(valid, jnp.sqrt(pair), 0.0)
        out_ref[0, 0] = jnp.sum(dist)


def loss_flow(f, *, tile_rows=None):
    """f: (1, H, W, 2) float -> scalar float32 (same semantics as Loss_flow.forward)."""
    assert f.ndim == 4 and f.shape[0] == 1 and f.shape[-1] == 2
    _, H, W, _ = f.shape
    assert H >= 3 and W >= 3, "flow field must be at least 3x3"
    W2 = 2 * W

    # Free contiguous reshape: (1, H, W, 2) -> (H, 2W); u at even lanes, v at odd lanes.
    f2 = f.reshape(H, W2).astype(jnp.float32)

    if tile_rows is None:
        # ~4 MiB row tiles (Pallas double-buffers them); keep sublane (8) alignment.
        tile_rows = max(8, ((4 << 20) // (W2 * 4)) // 8 * 8)
    if tile_rows >= H:
        TH = H                                    # single full-height block (always legal)
    else:
        TH = max(8, (tile_rows // 8) * 8)         # multiple of 8 for the (8,128) rule
    grid = (pl.cdiv(H, TH),)

    kernel = functools.partial(_loss_flow_kernel, H=H, W=W, TH=TH)

    out = pl.pallas_call(
        kernel,
        out_shape=jax.ShapeDtypeStruct((1, 1), jnp.float32),
        grid_spec=pltpu.PrefetchScalarGridSpec(
            num_scalar_prefetch=0,
            grid=grid,
            in_specs=[pl.BlockSpec((TH, W2), lambda i: (i, 0))],
            out_specs=pl.BlockSpec(memory_space=pltpu.MemorySpace.SMEM),
            scratch_shapes=[
                pltpu.VMEM((1, W2 - 2), jnp.float32),   # per-column sum of squares
                pltpu.VMEM((1, W2), jnp.float32),       # carried last row of prev tile
            ],
        ),
        compiler_params=pltpu.CompilerParams(
            dimension_semantics=("arbitrary",),   # sequential reduction axis with carry
        ),
    )(f2)
    return out[0, 0]


if __name__ == "__main__":
    key = jax.random.PRNGKey(0)
    H, W = 16, 16
    f = jax.random.normal(key, (1, H, W, 2), dtype=jnp.float32)

    # tile_rows=8 -> 2 grid steps: exercises init / carry / boundary / finalize paths.
    out = loss_flow(f, tile_rows=8)
    out = jax.block_until_ready(out)

    # Plain-numpy reference of the exact PyTorch forward semantics.
    filters = _build_filters()          # (8,1,3,3); only channel 0 feeds the loss ([0][0])
    fn = np.asarray(f)
    u_np = fn[0, :, :, 0]
    v_np = fn[0, :, :, 1]
    k0 = filters[0, 0]
    oh, ow = H - 2, W - 2
    du = np.zeros((oh, ow), np.float32)
    dv = np.zeros((oh, ow), np.float32)
    for dy in range(3):
        for dx in range(3):
            du += k0[dy, dx] * u_np[dy:dy + oh, dx:dx + ow]
            dv += k0[dy, dx] * v_np[dy:dy + oh, dx:dx + ow]
    ref = np.sqrt((du * du).sum(axis=0) + (dv * dv).sum(axis=0)).sum()

    assert np.allclose(float(out), float(ref), rtol=1e-4, atol=1e-4), (float(out), float(ref))
    print("KERNEL_OK")
</pallas_src>

<mosaic_0001>
module attributes {stable_mosaic.version = 11 : i64} {
  func.func @_loss_flow_kernel(%arg0: i32, %arg1: memref<8x32xf32, #tpu.memory_space<vmem>>, %arg2: memref<1x1xf32, #tpu.memory_space<smem>>, %arg3: memref<1x30xf32, #tpu.memory_space<vmem>>, %arg4: memref<1x32xf32, #tpu.memory_space<vmem>>) attributes {dimension_semantics = [#tpu.dimension_semantics<arbitrary>], iteration_bounds = array<i64: 2>, scalar_prefetch = 0 : i64, scratch_operands = 2 : i64, tpu.core_type = #tpu.core_type<tc>, window_params = [{transform_indices = @transform_0, window_bounds = array<i64: 8, 32>}, {transform_indices = @transform_1, window_bounds = array<i64: 1, 1>}]} {
    %c0_i32 = arith.constant 0 : i32
    %0 = arith.cmpi eq, %arg0, %c0_i32 : i32
    %1 = arith.extui %0 : i1 to i32
    %c0_i32_0 = arith.constant 0 : i32
    %2 = arith.cmpi ne, %1, %c0_i32_0 : i32
    scf.if %2 {
      %cst_13 = arith.constant 0.000000e+00 : f32
      %32 = vector.broadcast %cst_13 : f32 to vector<1x30xf32>
      %c0_14 = arith.constant 0 : index
      %c0_15 = arith.constant 0 : index
      %33 = vector.load %arg3[%c0_14, %c0_15] : memref<1x30xf32, #tpu.memory_space<vmem>>, vector<1x30xf32>
      tpu.vector_store %arg3[%c0_14, %c0_15], %32 {strides = array<i32>} : memref<1x30xf32, #tpu.memory_space<vmem>>, vector<1x30xf32>,
    } else {
    }
    %c0 = arith.constant 0 : index
    %c0_1 = arith.constant 0 : index
    %3 = vector.load %arg1[%c0, %c0_1] : memref<8x32xf32, #tpu.memory_space<vmem>>, vector<8x32xf32>
    %4 = vector.extract_strided_slice %3 {offsets = [1, 2], sizes = [7, 30], strides = [1, 1]} : vector<8x32xf32> to vector<7x30xf32>
    %5 = vector.extract_strided_slice %3 {offsets = [0, 0], sizes = [7, 30], strides = [1, 1]} : vector<8x32xf32> to vector<7x30xf32>
    %6 = arith.subf %4, %5 : vector<7x30xf32>
    %c8_i32 = arith.constant 8 : i32
    %7 = arith.muli %arg0, %c8_i32 : i32
    %8 = tpu.iota {dimensions = array<i32: 0>} : vector<7x30xi32>
    %9 = vector.broadcast %7 : i32 to vector<7x30xi32>
    %10 = arith.addi %9, %8 : vector<7x30xi32>
    %c13_i32 = arith.constant 13 : i32
    %11 = vector.broadcast %c13_i32 : i32 to vector<7x30xi32>
    %12 = arith.cmpi sle, %10, %11 : vector<7x30xi32>
    %cst = arith.constant 0.000000e+00 : f32
    %13 = vector.broadcast %cst : f32 to vector<7x30xf32>
    %14 = arith.select %12, %6, %13 : vector<7x30xi1>, vector<7x30xf32>
    %c0_2 = arith.constant 0 : index
    %c0_3 = arith.constant 0 : index
    %15 = vector.load %arg3[%c0_2, %c0_3] : memref<1x30xf32, #tpu.memory_space<vmem>>, vector<1x30xf32>
    %16 = arith.mulf %14, %14 : vector<7x30xf32>
    %cst_4 = arith.constant dense<0.000000e+00> : vector<30xf32>
    %17 = vector.multi_reduction <add>, %16, %cst_4 [0] : vector<7x30xf32> to vector<30xf32>
    %18 = vector.shape_cast %17 : vector<30xf32> to vector<1x30xf32>
    %19 = arith.addf %15, %18 : vector<1x30xf32>
    %c0_5 = arith.constant 0 : index
    %c0_6 = arith.constant 0 : index
    %20 = vector.load %arg3[%c0_5, %c0_6] : memref<1x30xf32, #tpu.memory_space<vmem>>, vector<1x30xf32>
    tpu.vector_store %arg3[%c0_5, %c0_6], %19 {strides = array<i32>} : memref<1x30xf32, #tpu.memory_space<vmem>>, vector<1x30xf32>,
    %c0_i32_7 = arith.constant 0 : i32
    %21 = arith.cmpi sgt, %arg0, %c0_i32_7 : i32
    %c8_i32_8 = arith.constant 8 : i32
    %22 = arith.muli %arg0, %c8_i32_8 : i32
    %c14_i32 = arith.constant 14 : i32
    %23 = arith.cmpi sle, %22, %c14_i32 : i32
    %24 = arith.andi %21, %23 : i1
    %25 = arith.extui %24 : i1 to i32
    %c0_i32_9 = arith.constant 0 : i32
    %26 = arith.cmpi ne, %25, %c0_i32_9 : i32
    scf.if %26 {
      %c0_13 = arith.constant 0 : index
      %c0_14 = arith.constant 0 : index
      %32 = vector.load %arg4[%c0_13, %c0_14] : memref<1x32xf32, #tpu.memory_space<vmem>>, vector<1x32xf32>
      %33 = vector.extract_strided_slice %3 {offsets = [0, 2], sizes = [1, 30], strides = [1, 1]} : vector<8x32xf32> to vector<1x30xf32>
      %34 = vector.extract_strided_slice %32 {offsets = [0, 0], sizes = [1, 30], strides = [1, 1]} : vector<1x32xf32> to vector<1x30xf32>
      %35 = arith.subf %33, %34 : vector<1x30xf32>
      %c0_15 = arith.constant 0 : index
      %c0_16 = arith.constant 0 : index
      %36 = vector.load %arg3[%c0_15, %c0_16] : memref<1x30xf32, #tpu.memory_space<vmem>>, vector<1x30xf32>
      %37 = arith.mulf %35, %35 : vector<1x30xf32>
      %38 = arith.addf %36, %37 : vector<1x30xf32>
      %c0_17 = arith.constant 0 : index
      %c0_18 = arith.constant 0 : index
      %39 = vector.load %arg3[%c0_17, %c0_18] : memref<1x30xf32, #tpu.memory_space<vmem>>, vector<1x30xf32>
      tpu.vector_store %arg3[%c0_17, %c0_18], %38 {strides = array<i32>} : memref<1x30xf32, #tpu.memory_space<vmem>>, vector<1x30xf32>,
    } else {
    }
    %27 = vector.extract_strided_slice %3 {offsets = [7, 0], sizes = [1, 32], strides = [1, 1]} : vector<8x32xf32> to vector<1x32xf32>
    %c0_10 = arith.constant 0 : index
    %c0_11 = arith.constant 0 : index
    %28 = vector.load %arg4[%c0_10, %c0_11] : memref<1x32xf32, #tpu.memory_space<vmem>>, vector<1x32xf32>
    tpu.vector_store %arg4[%c0_10, %c0_11], %27 {strides = array<i32>} : memref<1x32xf32, #tpu.memory_space<vmem>>, vector<1x32xf32>,
    %c1_i32 = arith.constant 1 : i32
    %29 = arith.cmpi eq, %arg0, %c1_i32 : i32
    %30 = arith.extui %29 : i1 to i32
    %c0_i32_12 = arith.constant 0 : i32
    %31 = arith.cmpi ne, %30, %c0_i32_12 : i32
    scf.if %31 {
      %c0_13 = arith.constant 0 : index
      %c0_14 = arith.constant 0 : index
      %32 = vector.load %arg3[%c0_13, %c0_14] : memref<1x30xf32, #tpu.memory_space<vmem>>, vector<1x30xf32>
      %33 = vector.extract_strided_slice %32 {offsets = [0, 0], sizes = [1, 29], strides = [1, 1]} : vector<1x30xf32> to vector<1x29xf32>
      %34 = vector.extract_strided_slice %32 {offsets = [0, 1], sizes = [1, 29], strides = [1, 1]} : vector<1x30xf32> to vector<1x29xf32>
      %35 = arith.addf %33, %34 : vector<1x29xf32>
      %36 = tpu.iota {dimensions = array<i32: 1>} : vector<1x29xi32>
      %c1_i32_15 = arith.constant 1 : i32
      %37 = vector.broadcast %c1_i32_15 : i32 to vector<1x29xi32>
      %38 = arith.andi %36, %37 : vector<1x29xi32>
      %c0_i32_16 = arith.constant 0 : i32
      %39 = vector.broadcast %c0_i32_16 : i32 to vector<1x29xi32>
      %40 = arith.cmpi eq, %38, %39 : vector<1x29xi32>
      %c26_i32 = arith.constant 26 : i32
      %41 = vector.broadcast %c26_i32 : i32 to vector<1x29xi32>
      %42 = arith.cmpi sle, %36, %41 : vector<1x29xi32>
      %43 = arith.andi %40, %42 : vector<1x29xi1>
      %44 = math.sqrt %35 : vector<1x29xf32>
      %cst_17 = arith.constant 0.000000e+00 : f32
      %45 = vector.broadcast %cst_17 : f32 to vector<1x29xf32>
      %46 = arith.select %43, %44, %45 : vector<1x29xi1>, vector<1x29xf32>
      %47 = vector.shape_cast %46 : vector<1x29xf32> to vector<1x1x29xf32>
      %cst_18 = arith.constant dense<0.000000e+00> : vector<1xf32>
      %48 = vector.multi_reduction <add>, %47, %cst_18 [1, 2] : vector<1x1x29xf32> to vector<1xf32>
      %49 = vector.shape_cast %48 : vector<1xf32> to vector<1x1x1xf32>
      %50 = vector.extract %49[0, 0, 0] : f32 from vector<1x1x1xf32>
      %c0_19 = arith.constant 0 : index
      %c0_20 = arith.constant 0 : index
      %51 = memref.load %arg2[%c0_19, %c0_20] : memref<1x1xf32, #tpu.memory_space<smem>>
      memref.store %50, %arg2[%c0_19, %c0_20] : memref<1x1xf32, #tpu.memory_space<smem>>
    } else {
    }
    return
  }
  func.func @transform_0(%arg0: i32) -> (i32, i32) {
    %c0_i32 = arith.constant 0 : i32
    %c0_i32_0 = arith.constant 0 : i32
    return %arg0, %c0_i32 : i32, i32
  }
  func.func @transform_1(%arg0: i32) -> (i32, i32) {
    %c0_i32 = arith.constant 0 : i32
    %c0_i32_0 = arith.constant 0 : i32
    %c0_i32_1 = arith.constant 0 : i32
    return %c0_i32, %c0_i32_0 : i32, i32
  }
}

</mosaic_0001>

<llo_original>
// kernel: tpu_custom_call.1
$region0: #{tpu_custom_call.1}
  #allocation0 [shape = 'u32[]', space=smem, size = 0x4, offset = 0x4, fixed_abs, tag = 'smem constant byte address 0x4 - core index']
  #allocation1 [shape = 'u32[72,128]{1,0:T(1,128)}', space=vmem, size = 0x9000, scoped, tag = 'internal scratch']
  #allocation2 [shape = 'f32[1,30]{1,0:T(1,128)}', space=vmem, size = 0x200, scoped, tag = 'scratch operand']
  #allocation3 [shape = 'f32[1,32]{1,0:T(1,128)}', space=vmem, size = 0x200, scoped, tag = 'scratch operand']
  %s0 = inlined_call_operand.hbm [shape: f32[16,32], index: 0, kind: input, shape index: {}]
  %s1 = inlined_call_operand.hbm [shape: f32[1,1], index: 1, kind: output, shape index: {}]
  %s2 = sld [smem:[#allocation0]]
  $region53: #{tpu_custom_call.1} parent=0
    _
  %s4 = ssub.s32 1, %s2
  %s5 = scalar_select 0, %s4, %s2
  $region1: #{tpu_custom_call.1} parent=0
    #allocation4 [shape = 'u8[8192]{0}', space=vmem, size = 0x2000, scoped, tag = 'input window, operand 0']
    #allocation5 [shape = 's32[2]{0}', space=sflag, size = 0x8, scoped, tag = 'scoped memory for tpu_custom_call.1']
    #allocation6 [shape = 's32[2]{0}', space=sflag, size = 0x8, scoped, tag = 'scoped memory for tpu_custom_call.1']
    #allocation7 [shape = 'u8[512]{0}', space=smem, size = 0x200, scoped, tag = 'output window, operand 0, single buffered']
    %6 = vsyncpa [#allocation5], 0
    %s7 = scalar_lea.sflag [#allocation5], 1
    %8 = vsyncpa %s7, 0
    %9 = vsyncpa [#allocation6], 0
    loop: start=0, step=1, limit=4
    $region2: #{tpu_custom_call.1} parent=1 // loop_pre_header
      _
    $region3: #{tpu_custom_call.1} parent=1 // loop_header
      %s11 = sphi 0, %s15
      %p12 = scmp.ge.s32.totalorder %s11, 4
      %s21 = sphi 0, %s23
      %s24 = sphi 0, %s21
      %s25 = sphi 0, %s24
      %s41 = sphi 0, %s25
      %s45 = sphi 0, %s45
      %s47 = sphi 0, %s45
      %s48 = sphi 0, %s47
      %s62 = sphi 0, %s48
    $region4: #{tpu_custom_call.1} parent=1 // loop_header_branch
      %14 = sbr.rel (%p12) target = $region8
    $region5: #{tpu_custom_call.1} parent=1 // loop_body
      %s16 = ssub.s32 %s11, 1
      %s17 = ssub.s32 %s11, 2
      %s18 = sadd.s32 %s11, 1
      %s19 = ssub.s32 %s11, %s18
      %p20 = scmp.eq.s32.totalorder %s19, 0
      %s22 = sadd.s32 %s21, 1
      %s23 = scalar_select %p20, %s21, %s22
      %p26 = pneg %p20
      %p27 = scmp.eq.s32.totalorder %s11, 1
      %p28 = por %p26, %p27
      %p29 = scmp.ne.s32.totalorder %s21, %s24
      %p30 = scmp.eq.s32.totalorder %s11, 0
      %p31 = por %p29, %p30
      %p32 = scmp.ne.s32.totalorder %s21, %s24
      %p33 = scmp.eq.s32.totalorder %s16, 1
      %p34 = por %p32, %p33
      %p35 = scmp.ne.s32.totalorder %s24, %s25
      %p36 = scmp.eq.s32.totalorder %s16, 0
      %p37 = por %p35, %p36
      %p38 = scmp.ne.s32.totalorder %s24, %s25
      %p39 = scmp.eq.s32.totalorder %s17, 1
      %p40 = por %p38, %p39
      %p42 = scmp.ne.s32.totalorder %s25, %s41
      %p43 = scmp.eq.s32.totalorder %s17, 0
      %p44 = por %p42, %p43
      %s46 = sadd.s32 %s45, 1
      %p49 = scmp.eq.s32.totalorder %s11, 1
      %p50 = scmp.ne.s32.totalorder %s45, %s47
      %p51 = scmp.eq.s32.totalorder %s11, 0
      %p52 = por %p50, %p51
      %p53 = scmp.ne.s32.totalorder %s45, %s47
      %p54 = scmp.eq.s32.totalorder %s16, 1
      %p55 = por %p53, %p54
      %p56 = scmp.ne.s32.totalorder %s47, %s48
      %p57 = scmp.eq.s32.totalorder %s16, 0
      %p58 = por %p56, %p57
      %p59 = scmp.ne.s32.totalorder %s47, %s48
      %p60 = scmp.eq.s32.totalorder %s17, 1
      %p61 = por %p59, %p60
      %p63 = scmp.ne.s32.totalorder %s48, %s62
      %p64 = scmp.eq.s32.totalorder %s17, 0
      %p65 = por %p63, %p64
      %p66 = scmp.le.s32.totalorder 1, %s11
      %p67 = scmp.lt.s32.totalorder %s11, 3
      %p68 = pnand %p66, %p67
      %p69 = pneg %p68
      // Predicated region
      $region9: #{tpu_custom_call.1} parent=5 // pred_check
        _
      $region10: #{tpu_custom_call.1} parent=5 // pred_check_branch
        %71 = sbr.rel (%p68) target = $region12
      $region11: #{tpu_custom_call.1} parent=5 // pred_region
        %s72 = ssub.s32 %s11, 1
      $region12: #{tpu_custom_call.1} parent=5 // pred_fallthru
        _
      %p73 = scmp.lt.s32.totalorder %s11, 2
      // Predicated region
      $region13: #{tpu_custom_call.1} parent=5 // pred_check
        %p74 = pneg %p73
      $region14: #{tpu_custom_call.1} parent=5 // pred_check_branch
        %76 = sbr.rel (%p74) target = $region16
      $region15: #{tpu_custom_call.1} parent=5 // pred_region
        // Predicated region
        $region17: #{tpu_custom_call.1} parent=15 // pred_check
          %p77 = pneg %p31
        $region18: #{tpu_custom_call.1} parent=15 // pred_check_branch
          %79 = sbr.rel (%p77) target = $region20
        $region19: #{tpu_custom_call.1} parent=15 // pred_region
          %s80 = sand.u32 %s21, 1
          %s81 = scalar_lea.sflag [#allocation5], %s80
          %s82 = sand.u32 %s21, 1
          %s83 = smul.addr %s82, 8
          %s84 = scalar_lea.vmem [#allocation4], %s83
          %86 = vsyncadd %s81, 0
          %s87 = smul.addr %s11, 8
          %s88 = scalar_lea.hbm %s0, %s87
          %s90 = sshll.u32 %s88, 4
          %s91 = int_to_ptr.hbm [resolvable:$true] %s90
          %s92 = sshll.u32 %s84, 4
          %s93 = int_to_ptr.vmem [resolvable:$true] %s92
          %95 = dma.hbm_to_vmem [thread:$0]  %s91, 128, %s93, %s81
        $region20: #{tpu_custom_call.1} parent=15 // pred_fallthru
          _
      $region16: #{tpu_custom_call.1} parent=5 // pred_fallthru
        _
      %p96 = scmp.le.s32.totalorder 1, %s11
      %p97 = scmp.lt.s32.totalorder %s11, 3
      %p98 = pnand %p96, %p97
      %p99 = pneg %p98
      // Predicated region
      $region21: #{tpu_custom_call.1} parent=5 // pred_check
        _
      $region22: #{tpu_custom_call.1} parent=5 // pred_check_branch
        %101 = sbr.rel (%p98) target = $region24
      $region23: #{tpu_custom_call.1} parent=5 // pred_region
        %s102 = ssub.s32 %s11, 1
        %s103 = sand.u32 %s24, 1
        %s104 = scalar_lea.sflag [#allocation5], %s103
        %s105 = sand.u32 %s24, 1
        %s106 = smul.addr %s105, 8
        %s107 = scalar_lea.vmem [#allocation4], %s106
        // Predicated region
        $region25: #{tpu_custom_call.1} parent=23 // pred_check
          %p108 = pneg %p37
        $region26: #{tpu_custom_call.1} parent=23 // pred_check_branch
          %110 = sbr.rel (%p108) target = $region28
        $region27: #{tpu_custom_call.1} parent=23 // pred_region
          %112 = dma.done %s104, 128
        $region28: #{tpu_custom_call.1} parent=23 // pred_fallthru
          _
        %s113 = sand.u32 %s24, 1
        %s114 = scalar_lea.sflag [#allocation5], %s113
        %s115 = sand.u32 %s24, 1
        %s116 = smul.addr %s115, 8
        %s117 = scalar_lea.vmem [#allocation4], %s116
        %p118 = pneg %p37
        %p119 = pneg %p34
        %p120 = pneg %p58
        %p121 = pneg %p55
        %p122 = scmp.eq.s32.totalorder %s16, 0
        // Predicated region
        $region29: #{tpu_custom_call.1} parent=23 // pred_check
          %p123 = pneg %p122
        $region30: #{tpu_custom_call.1} parent=23 // pred_check_branch
          %125 = sbr.rel (%p123) target = $region32
        $region31: #{tpu_custom_call.1} parent=23 // pred_region
          %vm126 = vcmask 237568
          %127 = vst.msk [vmem:[#allocation2] sm:$0x1] %vm126, 0.0
        $region32: #{tpu_custom_call.1} parent=23 // pred_fallthru
          _
        %v128 = vld [vmem:[%s107] sm:$0xff]
        %v130 = vrot.slane %v128, 7
        %131 = vrot.lane.b32.xlu0 %v130, 2
        %v132 = vpop.permute.xlu0 %131
        %v134 = vsub.f32 %v128, %v132
        %s135 = smul.u32 %s16, 8
        %v136 = vlaneseq
        %v137 = vshrl.u32 %v136, 7
        %v138 = vstv %s135
        %v139 = vadd.s32 %v138, %v137
        %vm140 = vcmp.le.s32.totalorder %v139, 13
        %v142 = vrot.slane %v134, 1
        %143 = vrot.lane.b32.xlu0 %v142, 126
        %v144 = vpop.permute.xlu0 %143
        %v146 = vsel %vm140, %v144, 0.0
        %v147 = vld [vmem:[#allocation2] sm:$0x1]
        %v148 = vmul.f32 %v146, %v146
        %vm149 = vcmask 243712
        %v150 = vsel %vm149, %v148, 0.0
        %v151 = vrot.slane %v150, 4
        %v152 = vadd.f32 %v150, %v151
        %v153 = vrot.slane %v152, 2
        %v154 = vadd.f32 %v152, %v153
        %v155 = vrot.slane %v154, 1
        %v156 = vadd.f32 %v154, %v155
        %v157 = vadd.f32 %v147, %v156
        %vm158 = vcmask 237568
        %159 = vst.msk [vmem:[#allocation2] sm:$0x1] %vm158, %v157
        %p160 = scmp.gt.s32.totalorder %s16, 0
        %p161 = scmp.le.s32.totalorder %s135, 14
        %p162 = pnand %p160, %p161
        %p163 = pneg %p162
        // Predicated region
        $region33: #{tpu_custom_call.1} parent=23 // pred_check
          _
        $region34: #{tpu_custom_call.1} parent=23 // pred_check_branch
          %165 = sbr.rel (%p162) target = $region36
        $region35: #{tpu_custom_call.1} parent=23 // pred_region
          %v166 = vld [vmem:[#allocation3] sm:$0x1]
          %v168 = vperm.slane %v166, 0
          %169 = vrot.lane.b32.xlu0 %v168, 2
          %v170 = vpop.permute.xlu0 %169
          %v172 = vsub.f32 %v128, %v170
          %v173 = vld [vmem:[#allocation2] sm:$0x1]
          %v174 = vmul.f32 %v172, %v172
          %176 = vrot.lane.b32.xlu0 %v174, 126
          %v177 = vpop.permute.xlu0 %176
          %v179 = vadd.f32 %v173, %v177
          %180 = vst.msk [vmem:[#allocation2] sm:$0x1] %vm158, %v179
        $region36: #{tpu_custom_call.1} parent=23 // pred_fallthru
          _
        %vm181 = vcmask 261127
        %182 = vst.msk [vmem:[#allocation3 - $0x7] sm:$0x80] %vm181, %v128
        %p183 = scmp.eq.s32.totalorder %s16, 1
        // Predicated region
        $region37: #{tpu_custom_call.1} parent=23 // pred_check
          %p184 = pneg %p183
        $region38: #{tpu_custom_call.1} parent=23 // pred_check_branch
          %186 = sbr.rel (%p184) target = $region40
        $region39: #{tpu_custom_call.1} parent=23 // pred_region
          %v187 = vld [vmem:[#allocation2] sm:$0x1]
          %189 = vrot.lane.b32.xlu0 %v187, 127
          %v190 = vpop.permute.xlu0 %189
          %v192 = vadd.f32 %v187, %v190
          %v193 = vlaneseq
          %v194 = vand.u32 %v193, 127
          %v195 = vand.u32 %v194, 1
          %vm196 = vcmp.eq.s32.totalorder %v195, 0
          %vm197 = vcmp.le.s32.totalorder %v194, 26
          %vm198 = vmand %vm196, %vm197
          %v199 = vrsqrt.pop %v192
          %v200 = vmul.f32 %v199, %v192
          %v201 = vmul.f32 %v200, %v199
          %v202 = vmul.f32 0.5, %v201
          %v203 = vsub.f32 1.5, %v202
          %v204 = vmul.f32 %v199, %v203
          %v205 = vmul.f32 %v192, %v204
          %vm206 = vcmp.eq.f32.partialorder %v192, inf
          %v207 = vsel %vm206, %v192, %v205
          %vm208 = vcmp.eq.f32.partialorder %v192, 0.0
          %v209 = vand.u32 %v192, 2147483648
          %v210 = vsel %vm208, %v209, %v207
          %v211 = vsel %vm198, %v210, 0.0
          %vm212 = vcmask 229376
          %v213 = vsel %vm212, %v211, 0.0
          %214 = vadd.xlane.f32.xlu0 %v213
          %v215 = vpop.xlane.xlu0 %214
          %v216 = vrot.slane %v215, 4
          %v217 = vadd.f32 %v215, %v216
          %v218 = vrot.slane %v217, 2
          %v219 = vadd.f32 %v217, %v218
          %v220 = vrot.slane %v219, 1
          %v221 = vadd.f32 %v219, %v220
          %s222 = vtos %v221
          %s223 = scalar_lea.smem [#allocation7], 0
          %224 = sst [smem:[%s223]] %s222
        $region40: #{tpu_custom_call.1} parent=23 // pred_fallthru
          _
        // Predicated region
        $region41: #{tpu_custom_call.1} parent=23 // pred_check
          %p225 = pneg %p55
        $region42: #{tpu_custom_call.1} parent=23 // pred_check_branch
          %227 = sbr.rel (%p225) target = $region44
        $region43: #{tpu_custom_call.1} parent=23 // pred_region
          %229 = vsyncadd [#allocation6], 0
          %s231 = sshll.u32 %s1, 4
          %s232 = int_to_ptr.hbm [resolvable:$true] %s231
          %234 = dma.smem_to_hbm [#allocation7], 16, %s232, [#allocation6]
        $region44: #{tpu_custom_call.1} parent=23 // pred_fallthru
          _
        // Predicated region
        $region45: #{tpu_custom_call.1} parent=23 // pred_check
          %p235 = pneg %p55
        $region46: #{tpu_custom_call.1} parent=23 // pred_check_branch
          %237 = sbr.rel (%p235) target = $region48
        $region47: #{tpu_custom_call.1} parent=23 // pred_region
          %239 = dma.done [#allocation6], 16
        $region48: #{tpu_custom_call.1} parent=23 // pred_fallthru
          _
        %240 = sfence
      $region24: #{tpu_custom_call.1} parent=5 // pred_fallthru
        _
      %p241 = scmp.le.s32.totalorder 2, %s11
      // Predicated region
      $region49: #{tpu_custom_call.1} parent=5 // pred_check
        %p242 = pneg %p241
      $region50: #{tpu_custom_call.1} parent=5 // pred_check_branch
        %244 = sbr.rel (%p242) target = $region52
      $region51: #{tpu_custom_call.1} parent=5 // pred_region
        %s245 = ssub.s32 %s11, 2
      $region52: #{tpu_custom_call.1} parent=5 // pred_fallthru
        _
    $region6: #{tpu_custom_call.1} parent=1 // loop_footer
      %s15 = sadd.s32 1, %s11
    $region7: #{tpu_custom_call.1} parent=1 // loop_footer_branch
      %10 = sbr.rel target = $region3
    $region8: #{tpu_custom_call.1} parent=1 // loop_exit
      _
    %246 = vsyncpa [#allocation5], 1
    %s247 = scalar_lea.sflag [#allocation5], 1
    %248 = vsyncpa %s247, 1
    %249 = vsyncpa [#allocation6], 1
    %s250 = scalar_lea.sflag [#allocation6], 1
    %251 = vsyncpa %s250, 1

</llo_original>
